<compile_context>
chip_gen: v7x
topology: tpu7x:2x2x1
jax: 0.10.0
libtpu: 0.0.40
codegen_flags: <defaults>
</compile_context>

<pallas_src>
import math

import jax
import jax.numpy as jnp
from jax.experimental import pallas as pl
from jax.experimental.pallas import tpu as pltpu


# ----------------------------- kernels --------------------------------------

def _cat_kernel(x_ref, pe_ref, o_ref):
    D = x_ref.shape[-1]
    o_ref[:, :D] = x_ref[...]
    o_ref[:, D:] = pe_ref[...]


def _cat_dropout_kernel(x_ref, pe_ref, m_ref, o_ref):
    # m_ref holds pre-scaled dropout multipliers (0 or 1/(1-p)).
    D = x_ref.shape[-1]
    o_ref[:, :D] = x_ref[...] * m_ref[:, :D]
    o_ref[:, D:] = pe_ref[...] * m_ref[:, D:]


def _add_kernel(x_ref, pe_ref, o_ref):
    o_ref[...] = x_ref[...] + pe_ref[...]


def _add_dropout_kernel(x_ref, pe_ref, m_ref, o_ref):
    o_ref[...] = (x_ref[...] + pe_ref[...]) * m_ref[...]


# --------------------------- pe buffer setup ---------------------------------

def _make_pe(d_model: int, max_len: int, cycle: float) -> jnp.ndarray:
    position = jnp.arange(max_len, dtype=jnp.float32)[:, None]          # [max_len, 1]
    div_term = jnp.exp(
        jnp.arange(0, d_model, 2, dtype=jnp.float32) * (-math.log(cycle) / d_model)
    )                                                                   # [d_model/2]
    pe = jnp.zeros((max_len, d_model), jnp.float32)
    pe = pe.at[:, 0::2].set(jnp.sin(position * div_term))
    pe = pe.at[:, 1::2].set(jnp.cos(position * div_term))
    return pe


def _round_up(n: int, m: int) -> int:
    return ((n + m - 1) // m) * m


# ------------------------------ module ---------------------------------------

class PositionalEncoding:
    def __init__(self, d_model: int, dropout: float = 0.1, max_len: int = 5000,
                 ecd_type: str = "cat", cycle: float = 100.0):
        self.d_model = d_model
        self.p = float(dropout)
        self.ecd_type = ecd_type
        self.pe = _make_pe(d_model, max_len, cycle)                     # [max_len, d_model] f32
        # dtype-matched copies are cached so there is no per-call astype copy.
        self._pe_cache = {jnp.dtype(jnp.float32): self.pe}

    # -- helpers --------------------------------------------------------------

    def _pe_as(self, dtype):
        dt = jnp.dtype(dtype)
        if dt not in self._pe_cache:
            self._pe_cache[dt] = self.pe.astype(dt)
        return self._pe_cache[dt]

    def _dropout_mult(self, shape, dtype, rng):
        # Inverted dropout: multiplier is 0 w.p. p, else 1/(1-p).
        # TODO(synk): generated host-side with jax.random because the stateful
        # TPU PRNG (pltpu.prng_seed) has no CPU/interpret lowering.
        if rng is None:
            rng = jax.random.PRNGKey(0)
        if self.p >= 1.0:                       # guard 1/(1-p) = inf edge case
            return jnp.zeros(shape, dtype)
        keep = jax.random.bernoulli(rng, 1.0 - self.p, shape)
        return keep.astype(dtype) * jnp.asarray(1.0 / (1.0 - self.p), dtype)

    # -- forward --------------------------------------------------------------

    def __call__(self, x: jnp.ndarray, frame_indices=None, *,
                 training: bool = False, rng=None) -> jnp.ndarray:
        S, D = x.shape
        assert D == self.d_model

        if self.ecd_type not in ("cat", "add"):
            # PyTorch forward falls through to dropout(x) only.
            # TODO(synk): dropout-only fallthrough kept in plain JAX.
            if training and self.p > 0.0:
                return x * self._dropout_mult(x.shape, x.dtype, rng)
            return x

        cat = self.ecd_type == "cat"
        out_dim = 2 * D if cat else D
        use_mask = training and self.p > 0.0

        # pe input: for the common frame_indices=None case pass the full buffer
        # and let the BlockSpec index_map pick rows [0, S) -- no wrapper copy.
        pe_full = self._pe_as(x.dtype)
        if frame_indices is not None and len(frame_indices) > 0:
            # TODO(synk): an in-kernel gather via scalar prefetch would remove
            # this extra HBM round trip; kept as a single fused XLA gather.
            idx = jnp.asarray(frame_indices, dtype=jnp.int32)
            pe_in = jnp.take(pe_full, idx, axis=0)                      # [S, D]
        else:
            pe_in = pe_full                                             # [max_len, D]

        # Tile the sequence axis: largest multiple of 8 whose double-buffered
        # tile set stays under ~8 MiB (safe vs. v5e's 16 MiB scoped default).
        itemsize = jnp.dtype(x.dtype).itemsize
        row_bytes = itemsize * (D + D + out_dim + (out_dim if use_mask else 0))
        budget = 4 * 1024 * 1024                 # per buffer set; x2 for double buffering
        bs_cap = max(8, (budget // max(row_bytes, 1)) // 8 * 8)
        bs = int(min(bs_cap, 2048, _round_up(S, 8)))
        grid = (pl.cdiv(S, bs),)                 # partial tail block is masked

        x_spec = pl.BlockSpec((bs, D), lambda i: (i, 0))
        pe_spec = pl.BlockSpec((bs, D), lambda i: (i, 0))
        o_spec = pl.BlockSpec((bs, out_dim), lambda i: (i, 0))

        if use_mask:
            mult = self._dropout_mult((S, out_dim), x.dtype, rng)
            kernel = _cat_dropout_kernel if cat else _add_dropout_kernel
            in_specs = [x_spec, pe_spec, pl.BlockSpec((bs, out_dim), lambda i: (i, 0))]
            args = (x, pe_in, mult)
        else:
            kernel = _cat_kernel if cat else _add_kernel
            in_specs = [x_spec, pe_spec]
            args = (x, pe_in)

        return pl.pallas_call(
            kernel,
            out_shape=jax.ShapeDtypeStruct((S, out_dim), x.dtype),
            grid=grid,
            in_specs=in_specs,
            out_specs=o_spec,
            compiler_params=pltpu.CompilerParams(
                dimension_semantics=("parallel",)),   # megacore sharding on v7x
        )(*args)


# TODO(synk): ActionHead's TransformerEncoder and Linear head are not ported
# here; this file covers the PositionalEncoding forward (the reviewed kernel).


if __name__ == "__main__":
    key = jax.random.PRNGKey(0)
    seq_len, d_model, max_len = 16, 32, 64

    x = jax.random.normal(key, (seq_len, d_model), dtype=jnp.float32)

    # ---- 'cat' (default), no frame_indices, eval mode (dropout = identity) ----
    pe_cat = PositionalEncoding(d_model, dropout=0.1, max_len=max_len,
                                ecd_type="cat", cycle=100.0)
    out_cat = pe_cat(x)
    jax.block_until_ready(out_cat)
    ref_cat = jnp.concatenate([x, pe_cat.pe[:seq_len]], axis=1)
    assert out_cat.shape == (seq_len, 2 * d_model)
    assert jnp.allclose(out_cat, ref_cat, atol=1e-6), "cat path mismatch"

    # ---- 'cat' with explicit frame_indices ----
    frame_indices = list(range(3, 3 + seq_len))
    out_cat_idx = pe_cat(x, frame_indices)
    jax.block_until_ready(out_cat_idx)
    ref_cat_idx = jnp.concatenate(
        [x, pe_cat.pe[jnp.asarray(frame_indices, jnp.int32)]], axis=1)
    assert jnp.allclose(out_cat_idx, ref_cat_idx, atol=1e-6), "cat+indices mismatch"

    # ---- 'add' path, eval mode ----
    pe_add = PositionalEncoding(d_model, dropout=0.1, max_len=max_len,
                                ecd_type="add", cycle=100.0)
    out_add = pe_add(x)
    jax.block_until_ready(out_add)
    ref_add = x + pe_add.pe[:seq_len]
    assert out_add.shape == (seq_len, d_model)
    assert jnp.allclose(out_add, ref_add, atol=1e-6), "add path mismatch"

    # ---- 'add' with a seq_len that is not a multiple of 8 (masked tail block) ----
    key2 = jax.random.PRNGKey(1)
    x2 = jax.random.normal(key2, (13, d_model), dtype=jnp.float32)
    out_add2 = pe_add(x2)
    jax.block_until_ready(out_add2)
    ref_add2 = x2 + pe_add.pe[:13]
    assert out_add2.shape == (13, d_model)
    assert jnp.allclose(out_add2, ref_add2, atol=1e-6), "add (ragged S) mismatch"

    # ---- train-mode dropout (wrapper-generated mask; exact reproduction) ----
    rng = jax.random.PRNGKey(123)
    out_drop = pe_cat(x, training=True, rng=rng)
    jax.block_until_ready(out_drop)
    keep = jax.random.bernoulli(rng, 1.0 - 0.1, (seq_len, 2 * d_model))
    mult = keep.astype(x.dtype) * jnp.asarray(1.0 / (1.0 - 0.1), x.dtype)
    ref_drop = ref_cat * mult
    assert out_drop.shape == (seq_len, 2 * d_model)
    assert jnp.allclose(out_drop, ref_drop, atol=1e-6), "dropout path mismatch"

    print("KERNEL_OK")
</pallas_src>

<mosaic_0001>
module attributes {stable_mosaic.version = 11 : i64} {
  func.func @_cat_kernel(%arg0: i32, %arg1: memref<16x32xf32, #tpu.memory_space<vmem>>, %arg2: memref<16x32xf32, #tpu.memory_space<vmem>>, %arg3: memref<16x64xf32, #tpu.memory_space<vmem>>) attributes {dimension_semantics = [#tpu.dimension_semantics<parallel>], iteration_bounds = array<i64: 1>, scalar_prefetch = 0 : i64, scratch_operands = 0 : i64, tpu.core_type = #tpu.core_type<tc>, window_params = [{transform_indices = @transform_0, window_bounds = array<i64: 16, 32>}, {transform_indices = @transform_1, window_bounds = array<i64: 16, 32>}, {transform_indices = @transform_2, window_bounds = array<i64: 16, 64>}]} {
    %c0 = arith.constant 0 : index
    %c0_0 = arith.constant 0 : index
    %0 = vector.load %arg1[%c0, %c0_0] : memref<16x32xf32, #tpu.memory_space<vmem>>, vector<16x32xf32>
    %c0_1 = arith.constant 0 : index
    %c0_2 = arith.constant 0 : index
    %1 = vector.load %arg3[%c0_1, %c0_2] : memref<16x64xf32, #tpu.memory_space<vmem>>, vector<16x32xf32>
    tpu.vector_store %arg3[%c0_1, %c0_2], %0 {strides = array<i32>} : memref<16x64xf32, #tpu.memory_space<vmem>>, vector<16x32xf32>,
    %c0_3 = arith.constant 0 : index
    %c0_4 = arith.constant 0 : index
    %2 = vector.load %arg2[%c0_3, %c0_4] : memref<16x32xf32, #tpu.memory_space<vmem>>, vector<16x32xf32>
    %c0_5 = arith.constant 0 : index
    %c32 = arith.constant 32 : index
    %3 = vector.load %arg3[%c0_5, %c32] : memref<16x64xf32, #tpu.memory_space<vmem>>, vector<16x32xf32>
    tpu.vector_store %arg3[%c0_5, %c32], %2 {strides = array<i32>} : memref<16x64xf32, #tpu.memory_space<vmem>>, vector<16x32xf32>,
    return
  }
  func.func @transform_0(%arg0: i32) -> (i32, i32) {
    %c0_i32 = arith.constant 0 : i32
    %c0_i32_0 = arith.constant 0 : i32
    return %arg0, %c0_i32 : i32, i32
  }
  func.func @transform_1(%arg0: i32) -> (i32, i32) {
    %c0_i32 = arith.constant 0 : i32
    %c0_i32_0 = arith.constant 0 : i32
    return %arg0, %c0_i32 : i32, i32
  }
  func.func @transform_2(%arg0: i32) -> (i32, i32) {
    %c0_i32 = arith.constant 0 : i32
    %c0_i32_0 = arith.constant 0 : i32
    return %arg0, %c0_i32 : i32, i32
  }
}

</mosaic_0001>

<llo_original>
// kernel: tpu_custom_call.1
$region0: #{tpu_custom_call.1}
  #allocation0 [shape = 'u32[]', space=smem, size = 0x4, offset = 0x4, fixed_abs, tag = 'smem constant byte address 0x4 - core index']
  #allocation1 [shape = 'u32[144,128]{1,0:T(1,128)}', space=vmem, size = 0x12000, scoped, tag = 'internal scratch']
  %s0 = inlined_call_operand.vmem [shape: f32[16,32], index: 0, kind: input, shape index: {}]
  %s1 = inlined_call_operand.vmem [shape: f32[64,32], index: 1, kind: input, shape index: {}]
  %s2 = inlined_call_operand.hbm [shape: f32[16,64], index: 2, kind: output, shape index: {}]
  %s3 = sld [smem:[#allocation0]]
  $region18: #{tpu_custom_call.1} parent=0
    _
  %s5 = ssub.s32 1, %s3
  %s6 = scalar_select 0, %s5, %s3
  $region1: #{tpu_custom_call.1} parent=0
    #allocation2 [shape = 'u8[8192]{0}', space=vmem, size = 0x2000, scoped, tag = 'output window, operand 0, single buffered']
    #allocation3 [shape = 's32[1]{0}', space=sflag, size = 0x4, scoped, tag = 'scoped memory for tpu_custom_call.1']
    %7 = vsyncpa [#allocation3], 0
    // Predicated region
    $region2: #{tpu_custom_call.1} parent=1 // pred_check
      _
    $region3: #{tpu_custom_call.1} parent=1 // pred_check_branch
      %9 = sbr.rel (0) target = $region5
    $region4: #{tpu_custom_call.1} parent=1 // pred_region
      _
    $region5: #{tpu_custom_call.1} parent=1 // pred_fallthru
      _
    // Predicated region
    $region6: #{tpu_custom_call.1} parent=1 // pred_check
      _
    $region7: #{tpu_custom_call.1} parent=1 // pred_check_branch
      %11 = sbr.rel (0) target = $region9
    $region8: #{tpu_custom_call.1} parent=1 // pred_region
      _
    $region9: #{tpu_custom_call.1} parent=1 // pred_fallthru
      _
    %v12 = vld [vmem:[%s0] sm:$0xff]
    %v13 = vld [vmem:[%s0 + $0x8] sm:$0xff]
    %vm14 = vcmask 261120
    %15 = vst.msk [vmem:[#allocation2] sm:$0xff] %vm14, %v12
    %16 = vst.msk [vmem:[#allocation2 + $0x8] sm:$0xff] %vm14, %v13
    %v17 = vld [vmem:[%s1] sm:$0xff]
    %v18 = vld [vmem:[%s1 + $0x8] sm:$0xff]
    %21 = vrot.lane.b32.xlu0 %v17, 32
    %v22 = vpop.permute.xlu0 %21
    %23 = vrot.lane.b32.xlu0 %v18, 32
    %v24 = vpop.permute.xlu0 %23
    %vm27 = vcmask 523520
    %28 = vst.msk [vmem:[#allocation2] sm:$0xff] %vm27, %v22
    %29 = vst.msk [vmem:[#allocation2 + $0x8] sm:$0xff] %vm27, %v24
    // Predicated region
    $region10: #{tpu_custom_call.1} parent=1 // pred_check
      _
    $region11: #{tpu_custom_call.1} parent=1 // pred_check_branch
      %31 = sbr.rel (0) target = $region13
    $region12: #{tpu_custom_call.1} parent=1 // pred_region
      %s33 = ssub.s32 256, 256
      %34 = vsyncadd [#allocation3], %s33
      %s35 = sshll.u32 [#allocation2], 4
      %s36 = int_to_ptr.vmem [resolvable:$true] %s35
      %41 = dma.vmem_to_hbm [thread:$0]  %s36, 256, %s2, [#allocation3], 128, 128, 8
    $region13: #{tpu_custom_call.1} parent=1 // pred_fallthru
      _
    // Predicated region
    $region14: #{tpu_custom_call.1} parent=1 // pred_check
      _
    $region15: #{tpu_custom_call.1} parent=1 // pred_check_branch
      %43 = sbr.rel (0) target = $region17
    $region16: #{tpu_custom_call.1} parent=1 // pred_region
      %44 = dma.done [#allocation3], 256
    $region17: #{tpu_custom_call.1} parent=1 // pred_fallthru
      _
    %45 = vsyncpa [#allocation3], 1

</llo_original>
